<compile_context>
chip_gen: v7x
topology: tpu7x:2x2x1
jax: 0.10.0
libtpu: 0.0.40
codegen_flags: <defaults>
</compile_context>

<pallas_src>
import functools

import jax
import jax.numpy as jnp
from jax.experimental import pallas as pl
from jax.experimental.pallas import tpu as pltpu


def _round_up(x, m):
    return (x + m - 1) // m * m


def _vmem_capacity_bytes():
    try:
        return int(pltpu.get_tpu_info().vmem_capacity_bytes)
    except Exception:
        return 64 * 1024 * 1024      # conservative (v7x per-TensorCore VMEM)


def _elementwise_dtype():
    """bf16 elementwise math only on chips with a bf16 VPU (v6e/Trillium, v7x)."""
    try:
        kind = jax.devices()[0].device_kind.lower()
    except Exception:
        return jnp.float32
    if any(tag in kind for tag in ("v6", "v7", "trillium", "tpu7")):
        return jnp.bfloat16
    return jnp.float32               # v5e has no bf16 VALU path -> keep f32


def _choose_rows(N, Ho, Wo, W, Cin, Cout_pad, vmem_cap):
    """Largest output-row tile R (divisor of Ho) whose block fits a VMEM budget."""
    budget = int(vmem_cap * 0.4)                        # headroom for compiler scratch

    def block_bytes(R):
        L, Lo = 2 * R * W, R * Wo
        b = 2 * Cin * L * 4                             # x block, double-buffered f32
        b += 2 * Cout_pad * Lo * 4                      # out block, double-buffered f32
        b += 2 * L * Lo * 2                             # pooling matrix bf16
        b += 2 * Cout_pad * Cin * 2                     # 1x1-conv weight bf16
        b += 4 * Cin * 128 * 4                          # scale/shift (lane-padded), tiny
        b += Cin * L * 6                                # in-kernel y temp (ew + bf16 copy)
        b += max(Cout_pad * L, Cin * Lo) * 6            # matmul intermediate (f32 + bf16)
        return b

    divisors = [d for d in range(1, Ho + 1) if Ho % d == 0]
    # BlockSpec divisibility: lane dims must be %128 == 0 unless they equal the
    # full (flat-spatial) array dim, i.e. R == Ho.
    valid = [d for d in divisors if d == Ho or (d * Wo) % 128 == 0]
    fitting = [d for d in valid if block_bytes(d) <= budget]
    if not fitting:
        # TODO(synk): uneven / padded row tiling for extremely large images.
        raise ValueError("no valid TransitionLayer row tile fits the VMEM budget")
    R = max(fitting)
    # v7x megacore: keep >= 2 grid steps so both TensorCores get work.
    if N * (Ho // R) < 2:
        smaller = [d for d in fitting if d <= Ho // 2]
        if smaller:
            R = max(smaller)
    return R


def _transition_kernel(x_ref, scale_ref, shift_ref, w_ref, p_ref, o_ref,
                       *, ew_dtype, channel_first):
    """Fused BN(affine, 0.25-folded) + ReLU + 1x1-conv + 2x2-avgpool on one (Cin, L) block."""
    x = x_ref[0].astype(ew_dtype)                              # (Cin, L)
    y = jnp.maximum(x * scale_ref[...] + shift_ref[...], 0.0)  # BN + ReLU, per-channel bcast
    y = y.astype(jnp.bfloat16)                                 # MXU operand (no-op if bf16)

    w = w_ref[...]                                             # (Cout_pad, Cin) bf16
    p = p_ref[...]                                             # (L, Lo) bf16 0/1 pool matrix
    if channel_first:
        t = jnp.dot(w, y, preferred_element_type=jnp.float32)              # (Cout_pad, L)
        out = jnp.dot(t.astype(jnp.bfloat16), p, preferred_element_type=jnp.float32)
    else:
        t = jnp.dot(y, p, preferred_element_type=jnp.float32)              # (Cin, Lo)
        out = jnp.dot(w, t.astype(jnp.bfloat16), preferred_element_type=jnp.float32)
    o_ref[0] = out.astype(o_ref.dtype)                         # (Cout_pad, Lo) -> NCHW flat


def transition_layer(x_nchw, gamma, beta, running_mean, running_var, conv_w,
                     *, eps=1e-5):
    """x_nchw: (N, Cin, H, W) f32.  conv_w: (Cout, Cin, 1, 1).  Returns (N, Cout, H/2, W/2)."""
    N, Cin, H, W = x_nchw.shape
    Cout = conv_w.shape[0]
    assert H % 2 == 0 and W % 2 == 0, "AvgPool2d(2,2) needs even H and W"
    Ho, Wo = H // 2, W // 2
    HW, HoWo = H * W, Ho * Wo

    ew_dtype = _elementwise_dtype()

    # Fold BN (inference) affine AND the 0.25 avg-pool factor into scale/shift
    # (ReLU commutes with the positive 0.25 factor, pooling is linear).
    g32 = gamma.astype(jnp.float32)
    inv_std = 1.0 / jnp.sqrt(running_var.astype(jnp.float32) + eps)
    scale = (g32 * inv_std * 0.25).reshape(Cin, 1).astype(ew_dtype)
    shift = ((beta.astype(jnp.float32) - running_mean.astype(jnp.float32) * g32 * inv_std)
             * 0.25).reshape(Cin, 1).astype(ew_dtype)

    # 1x1-conv weight as (Cout_pad, Cin) bf16; pad Cout to a sublane multiple of 8.
    Cout_pad = _round_up(Cout, 8)
    wmat = conv_w.reshape(Cout, Cin).astype(jnp.bfloat16)
    if Cout_pad != Cout:
        wmat = jnp.pad(wmat, ((0, Cout_pad - Cout), (0, 0)))

    vmem_cap = _vmem_capacity_bytes()
    R = _choose_rows(N, Ho, Wo, W, Cin, Cout_pad, vmem_cap)
    L, Lo = 2 * R * W, R * Wo
    grid = (N, Ho // R)

    # Constant 0/1 pooling matrix: P[l, lo] = 1 iff flat input index l (within a
    # block of R output rows) falls into 2x2 output window lo.  Exact in bf16.
    li = jnp.arange(L)
    lo_idx = ((li // W) // 2) * Wo + (li % W) // 2
    pool_mat = (lo_idx[:, None] == jnp.arange(Lo)[None, :]).astype(jnp.bfloat16)

    # Pick the matmul association with fewer MXU flops:
    #   pool-first:    W @ (y @ P)   ~ Lo*Cin*(L + Cout)
    #   channel-first: (W @ y) @ P   ~ L*Cout*(Cin + Lo)
    channel_first = (L * Cout_pad * (Cin + Lo)) < (Lo * Cin * (L + Cout_pad))

    x_flat = x_nchw.reshape(N, Cin, HW)                 # free metadata reshape (NCHW)

    kernel = functools.partial(_transition_kernel, ew_dtype=ew_dtype,
                               channel_first=channel_first)

    out = pl.pallas_call(
        kernel,
        out_shape=jax.ShapeDtypeStruct((N, Cout_pad, HoWo), jnp.float32),
        grid_spec=pltpu.PrefetchScalarGridSpec(
            num_scalar_prefetch=0,
            grid=grid,
            in_specs=[
                pl.BlockSpec((1, Cin, L), lambda n, t: (n, 0, t)),     # x (contiguous NCHW)
                pl.BlockSpec((Cin, 1), lambda n, t: (0, 0)),           # BN scale
                pl.BlockSpec((Cin, 1), lambda n, t: (0, 0)),           # BN shift
                pl.BlockSpec((Cout_pad, Cin), lambda n, t: (0, 0)),    # 1x1-conv weight
                pl.BlockSpec((L, Lo), lambda n, t: (0, 0)),            # pooling matrix
                # NOTE: the four grid-invariant operands keep constant block indices, so
                # their buffers are re-used across grid steps.
                # TODO(synk): pipeline_mode=pl.Buffered(1) on them would reclaim the
                #             second buffer on v7x's 64 MiB VMEM.
            ],
            out_specs=pl.BlockSpec((1, Cout_pad, Lo), lambda n, t: (n, 0, t)),
        ),
        compiler_params=pltpu.CompilerParams(
            dimension_semantics=("parallel", "parallel"),
            vmem_limit_bytes=int(min(vmem_cap * 3 // 4, 96 * 1024 * 1024)),
        ),
    )(x_flat, scale, shift, wmat, pool_mat)

    if Cout_pad != Cout:
        out = out[:, :Cout, :]
    return out.reshape(N, Cout, Ho, Wo)                 # already NCHW: reshape is free


def _reference(x, gamma, beta, mean, var, conv_w, eps=1e-5):
    """Plain-JAX f32 reference with PyTorch op order: BN -> ReLU -> 1x1 conv -> AvgPool2d(2,2)."""
    scale = gamma / jnp.sqrt(var + eps)
    shift = beta - mean * scale
    y = jnp.maximum(x * scale[None, :, None, None] + shift[None, :, None, None], 0.0)
    w2 = conv_w.reshape(conv_w.shape[0], conv_w.shape[1])       # (Cout, Cin)
    z = jnp.einsum('nchw,oc->nohw', y, w2)
    N, Co, H, W = z.shape
    return z.reshape(N, Co, H // 2, 2, W // 2, 2).mean(axis=(3, 5))


if __name__ == "__main__":
    N, Cin, H, W = 2, 8, 16, 16
    Cout = Cin // 2                                     # DenseNet transition halves channels

    key = jax.random.PRNGKey(0)
    kx, kg, kb, km, kv, kw = jax.random.split(key, 6)

    x = jax.random.normal(kx, (N, Cin, H, W), dtype=jnp.float32)
    gamma = jax.random.normal(kg, (Cin,), dtype=jnp.float32) * 0.1 + 1.0
    beta = jax.random.normal(kb, (Cin,), dtype=jnp.float32) * 0.1
    running_mean = jax.random.normal(km, (Cin,), dtype=jnp.float32) * 0.1
    running_var = jax.random.uniform(kv, (Cin,), dtype=jnp.float32,
                                     minval=0.5, maxval=1.5)
    conv_w = jax.random.normal(kw, (Cout, Cin, 1, 1), dtype=jnp.float32) * 0.1

    out = jax.block_until_ready(
        transition_layer(x, gamma, beta, running_mean, running_var, conv_w))

    ref = _reference(x, gamma, beta, running_mean, running_var, conv_w)
    assert out.shape == (N, Cout, H // 2, W // 2), out.shape
    max_err = float(jnp.max(jnp.abs(out - ref)))
    # bf16 matmul operands (and bf16 elementwise on v6e/v7x) -> loose-ish tolerance.
    assert jnp.allclose(out, ref, rtol=2e-2, atol=3e-2), max_err

    print("KERNEL_OK")
</pallas_src>

<mosaic_0001>
module attributes {stable_mosaic.version = 11 : i64} {
  func.func @_transition_kernel(%arg0: i32, %arg1: i32, %arg2: memref<1x8x256xf32, #tpu.memory_space<vmem>>, %arg3: memref<8x1xf32, #tpu.memory_space<vmem>>, %arg4: memref<8x1xf32, #tpu.memory_space<vmem>>, %arg5: memref<8x8xbf16, #tpu.memory_space<vmem>>, %arg6: memref<256x64xbf16, #tpu.memory_space<vmem>>, %arg7: memref<1x8x64xf32, #tpu.memory_space<vmem>>) attributes {dimension_semantics = [#tpu.dimension_semantics<parallel>, #tpu.dimension_semantics<parallel>], iteration_bounds = array<i64: 2, 1>, scalar_prefetch = 0 : i64, scratch_operands = 0 : i64, tpu.core_type = #tpu.core_type<tc>, window_params = [{transform_indices = @transform_0, window_bounds = array<i64: 1, 8, 256>}, {pipeline_mode = #tpu.pipeline_mode<synchronous>, transform_indices = @transform_1, window_bounds = array<i64: 8, 1>}, {pipeline_mode = #tpu.pipeline_mode<synchronous>, transform_indices = @transform_2, window_bounds = array<i64: 8, 1>}, {pipeline_mode = #tpu.pipeline_mode<synchronous>, transform_indices = @transform_3, window_bounds = array<i64: 8, 8>}, {pipeline_mode = #tpu.pipeline_mode<synchronous>, transform_indices = @transform_4, window_bounds = array<i64: 256, 64>}, {transform_indices = @transform_5, window_bounds = array<i64: 1, 8, 64>}]} {
    %c0 = arith.constant 0 : index
    %c0_0 = arith.constant 0 : index
    %c0_1 = arith.constant 0 : index
    %0 = vector.load %arg2[%c0, %c0_0, %c0_1] : memref<1x8x256xf32, #tpu.memory_space<vmem>>, vector<1x8x256xf32>
    %1 = vector.shape_cast %0 : vector<1x8x256xf32> to vector<8x256xf32>
    %c0_2 = arith.constant 0 : index
    %c0_3 = arith.constant 0 : index
    %2 = vector.load %arg3[%c0_2, %c0_3] : memref<8x1xf32, #tpu.memory_space<vmem>>, vector<8x1xf32>
    %3 = vector.broadcast %2 : vector<8x1xf32> to vector<8x256xf32>
    %4 = arith.mulf %1, %3 : vector<8x256xf32>
    %c0_4 = arith.constant 0 : index
    %c0_5 = arith.constant 0 : index
    %5 = vector.load %arg4[%c0_4, %c0_5] : memref<8x1xf32, #tpu.memory_space<vmem>>, vector<8x1xf32>
    %6 = vector.broadcast %5 : vector<8x1xf32> to vector<8x256xf32>
    %7 = arith.addf %4, %6 : vector<8x256xf32>
    %cst = arith.constant 0.000000e+00 : f32
    %8 = vector.broadcast %cst : f32 to vector<8x256xf32>
    %9 = arith.maximumf %7, %8 : vector<8x256xf32>
    %10 = arith.truncf %9 : vector<8x256xf32> to vector<8x256xbf16>
    %c0_6 = arith.constant 0 : index
    %c0_7 = arith.constant 0 : index
    %11 = vector.load %arg5[%c0_6, %c0_7] : memref<8x8xbf16, #tpu.memory_space<vmem>>, vector<8x8xbf16>
    %c0_8 = arith.constant 0 : index
    %c0_9 = arith.constant 0 : index
    %12 = vector.load %arg6[%c0_8, %c0_9] : memref<256x64xbf16, #tpu.memory_space<vmem>>, vector<256x64xbf16>
    %cst_10 = arith.constant dense<0.000000e+00> : vector<8x64xf32>
    %13 = tpu.matmul %10, %12, %cst_10 {dimension_numbers = #tpu.dot_dimension_numbers<[1], [0], [0], [1], [0, 0, 1, 1], [], []>} : vector<8x256xbf16>, vector<256x64xbf16>, vector<8x64xf32> -> vector<8x64xf32>
    %14 = arith.truncf %13 : vector<8x64xf32> to vector<8x64xbf16>
    %cst_11 = arith.constant dense<0.000000e+00> : vector<8x64xf32>
    %15 = tpu.matmul %11, %14, %cst_11 {dimension_numbers = #tpu.dot_dimension_numbers<[1], [0], [0], [1], [0, 0, 1, 1], [], []>} : vector<8x8xbf16>, vector<8x64xbf16>, vector<8x64xf32> -> vector<8x64xf32>
    %c0_12 = arith.constant 0 : index
    %c0_13 = arith.constant 0 : index
    %c0_14 = arith.constant 0 : index
    %16 = vector.load %arg7[%c0_12, %c0_13, %c0_14] : memref<1x8x64xf32, #tpu.memory_space<vmem>>, vector<1x8x64xf32>
    %17 = vector.shape_cast %16 : vector<1x8x64xf32> to vector<8x64xf32>
    %18 = vector.shape_cast %15 : vector<8x64xf32> to vector<1x8x64xf32>
    tpu.vector_store %arg7[%c0_12, %c0_13, %c0_14], %18 {strides = array<i32>} : memref<1x8x64xf32, #tpu.memory_space<vmem>>, vector<1x8x64xf32>,
    return
  }
  func.func @transform_0(%arg0: i32, %arg1: i32) -> (i32, i32, i32) {
    %c0_i32 = arith.constant 0 : i32
    %c0_i32_0 = arith.constant 0 : i32
    return %arg0, %c0_i32, %arg1 : i32, i32, i32
  }
  func.func @transform_1(%arg0: i32, %arg1: i32) -> (i32, i32) {
    %c0_i32 = arith.constant 0 : i32
    %c0_i32_0 = arith.constant 0 : i32
    %c0_i32_1 = arith.constant 0 : i32
    return %c0_i32, %c0_i32_0 : i32, i32
  }
  func.func @transform_2(%arg0: i32, %arg1: i32) -> (i32, i32) {
    %c0_i32 = arith.constant 0 : i32
    %c0_i32_0 = arith.constant 0 : i32
    %c0_i32_1 = arith.constant 0 : i32
    return %c0_i32, %c0_i32_0 : i32, i32
  }
  func.func @transform_3(%arg0: i32, %arg1: i32) -> (i32, i32) {
    %c0_i32 = arith.constant 0 : i32
    %c0_i32_0 = arith.constant 0 : i32
    %c0_i32_1 = arith.constant 0 : i32
    return %c0_i32, %c0_i32_0 : i32, i32
  }
  func.func @transform_4(%arg0: i32, %arg1: i32) -> (i32, i32) {
    %c0_i32 = arith.constant 0 : i32
    %c0_i32_0 = arith.constant 0 : i32
    %c0_i32_1 = arith.constant 0 : i32
    return %c0_i32, %c0_i32_0 : i32, i32
  }
  func.func @transform_5(%arg0: i32, %arg1: i32) -> (i32, i32, i32) {
    %c0_i32 = arith.constant 0 : i32
    %c0_i32_0 = arith.constant 0 : i32
    return %arg0, %c0_i32, %arg1 : i32, i32, i32
  }
}

</mosaic_0001>

<llo_original>
// kernel: tpu_custom_call.1
$region0: #{tpu_custom_call.1}
  #allocation0 [shape = 'u32[]', space=smem, size = 0x4, offset = 0x4, fixed_abs, tag = 'smem constant byte address 0x4 - core index']
  #allocation1 [shape = 'u32[144,128]{1,0:T(1,128)}', space=vmem, size = 0x12000, scoped, tag = 'internal scratch']
  %s0 = inlined_call_operand.vmem [shape: f32[2,8,256], index: 0, kind: input, shape index: {}]
  %s1 = inlined_call_operand.vmem [shape: f32[8,1], index: 1, kind: input, shape index: {}]
  %s2 = inlined_call_operand.vmem [shape: f32[8,1], index: 2, kind: input, shape index: {}]
  %s3 = inlined_call_operand.vmem [shape: bf16[8,8], index: 3, kind: input, shape index: {}]
  %s4 = inlined_call_operand.vmem [shape: bf16[256,64], index: 4, kind: input, shape index: {}]
  %s5 = inlined_call_operand.hbm [shape: f32[2,8,64], index: 5, kind: output, shape index: {}]
  %s6 = sld [smem:[#allocation0]]
  $region53: #{tpu_custom_call.1} parent=0
    _
  %s8 = ssub.s32 1, %s6
  %s9 = scalar_select 0, %s8, %s6
  $region1: #{tpu_custom_call.1} parent=0
    #allocation2 [shape = 'u8[8192]{0}', space=vmem, size = 0x2000, scoped, tag = 'output window, operand 0']
    #allocation3 [shape = 's32[2]{0}', space=sflag, size = 0x8, scoped, tag = 'scoped memory for tpu_custom_call.1']
    %10 = vsyncpa [#allocation3], 0
    %s11 = scalar_lea.sflag [#allocation3], 1
    %12 = vsyncpa %s11, 0
    loop: start=0, step=1, limit=4
    $region2: #{tpu_custom_call.1} parent=1 // loop_pre_header
      _
    $region3: #{tpu_custom_call.1} parent=1 // loop_header
      %s14 = sphi 0, %s18
      %p15 = scmp.ge.s32.totalorder %s14, 4
      %s21 = sphi 0, %s33
      %s22 = sphi 0, %s29
      %s23 = sphi 0, %s21
      %s24 = sphi 0, %s22
      %s25 = sphi 0, %s23
      %s26 = sphi 0, %s24
      %s38 = sphi 0, %s40
      %s41 = sphi 0, %s38
      %s42 = sphi 0, %s41
      %s58 = sphi 0, %s42
      %s62 = sphi 0, %s62
      %s64 = sphi 0, %s62
      %s65 = sphi 0, %s64
      %s79 = sphi 0, %s65
      %s83 = sphi 0, %s83
      %s85 = sphi 0, %s83
      %s86 = sphi 0, %s85
      %s100 = sphi 0, %s86
      %s104 = sphi 0, %s104
      %s106 = sphi 0, %s104
      %s107 = sphi 0, %s106
      %s121 = sphi 0, %s107
      %s125 = sphi 0, %s125
      %s127 = sphi 0, %s125
      %s128 = sphi 0, %s127
      %s142 = sphi 0, %s128
      %s150 = sphi 0, %s152
      %s153 = sphi 0, %s150
      %s154 = sphi 0, %s153
      %s170 = sphi 0, %s154
    $region4: #{tpu_custom_call.1} parent=1 // loop_header_branch
      %17 = sbr.rel (%p15) target = $region8
    $region5: #{tpu_custom_call.1} parent=1 // loop_body
      %s19 = ssub.s32 %s14, 1
      %s20 = ssub.s32 %s14, 2
      %s27 = sadd.s32 1, %s22
      %p28 = scmp.ge.s32.totalorder %s27, 1
      %s29 = scalar_select %p28, 0, %s27
      %s30 = sadd.s32 1, %s21
      %s31 = scalar_select %p28, %s30, %s21
      %p32 = scmp.ge.s32.totalorder %s31, 2
      %s33 = scalar_select %p32, 0, %s31
      %s34 = ssub.s32 %s21, %s33
      %s35 = ssub.s32 %s22, %s29
      %s36 = sor.u32 %s34, %s35
      %p37 = scmp.eq.s32.totalorder %s36, 0
      %s39 = sadd.s32 %s38, 1
      %s40 = scalar_select %p37, %s38, %s39
      %p43 = pneg %p37
      %p44 = scmp.eq.s32.totalorder %s14, 1
      %p45 = por %p43, %p44
      %p46 = scmp.ne.s32.totalorder %s38, %s41
      %p47 = scmp.eq.s32.totalorder %s14, 0
      %p48 = por %p46, %p47
      %p49 = scmp.ne.s32.totalorder %s38, %s41
      %p50 = scmp.eq.s32.totalorder %s19, 1
      %p51 = por %p49, %p50
      %p52 = scmp.ne.s32.totalorder %s41, %s42
      %p53 = scmp.eq.s32.totalorder %s19, 0
      %p54 = por %p52, %p53
      %p55 = scmp.ne.s32.totalorder %s41, %s42
      %p56 = scmp.eq.s32.totalorder %s20, 1
      %p57 = por %p55, %p56
      %p59 = scmp.ne.s32.totalorder %s42, %s58
      %p60 = scmp.eq.s32.totalorder %s20, 0
      %p61 = por %p59, %p60
      %s63 = sadd.s32 %s62, 1
      %p66 = scmp.eq.s32.totalorder %s14, 1
      %p67 = scmp.ne.s32.totalorder %s62, %s64
      %p68 = scmp.eq.s32.totalorder %s14, 0
      %p69 = por %p67, %p68
      %p70 = scmp.ne.s32.totalorder %s62, %s64
      %p71 = scmp.eq.s32.totalorder %s19, 1
      %p72 = por %p70, %p71
      %p73 = scmp.ne.s32.totalorder %s64, %s65
      %p74 = scmp.eq.s32.totalorder %s19, 0
      %p75 = por %p73, %p74
      %p76 = scmp.ne.s32.totalorder %s64, %s65
      %p77 = scmp.eq.s32.totalorder %s20, 1
      %p78 = por %p76, %p77
      %p80 = scmp.ne.s32.totalorder %s65, %s79
      %p81 = scmp.eq.s32.totalorder %s20, 0
      %p82 = por %p80, %p81
      %s84 = sadd.s32 %s83, 1
      %p87 = scmp.eq.s32.totalorder %s14, 1
      %p88 = scmp.ne.s32.totalorder %s83, %s85
      %p89 = scmp.eq.s32.totalorder %s14, 0
      %p90 = por %p88, %p89
      %p91 = scmp.ne.s32.totalorder %s83, %s85
      %p92 = scmp.eq.s32.totalorder %s19, 1
      %p93 = por %p91, %p92
      %p94 = scmp.ne.s32.totalorder %s85, %s86
      %p95 = scmp.eq.s32.totalorder %s19, 0
      %p96 = por %p94, %p95
      %p97 = scmp.ne.s32.totalorder %s85, %s86
      %p98 = scmp.eq.s32.totalorder %s20, 1
      %p99 = por %p97, %p98
      %p101 = scmp.ne.s32.totalorder %s86, %s100
      %p102 = scmp.eq.s32.totalorder %s20, 0
      %p103 = por %p101, %p102
      %s105 = sadd.s32 %s104, 1
      %p108 = scmp.eq.s32.totalorder %s14, 1
      %p109 = scmp.ne.s32.totalorder %s104, %s106
      %p110 = scmp.eq.s32.totalorder %s14, 0
      %p111 = por %p109, %p110
      %p112 = scmp.ne.s32.totalorder %s104, %s106
      %p113 = scmp.eq.s32.totalorder %s19, 1
      %p114 = por %p112, %p113
      %p115 = scmp.ne.s32.totalorder %s106, %s107
      %p116 = scmp.eq.s32.totalorder %s19, 0
      %p117 = por %p115, %p116
      %p118 = scmp.ne.s32.totalorder %s106, %s107
      %p119 = scmp.eq.s32.totalorder %s20, 1
      %p120 = por %p118, %p119
      %p122 = scmp.ne.s32.totalorder %s107, %s121
      %p123 = scmp.eq.s32.totalorder %s20, 0
      %p124 = por %p122, %p123
      %s126 = sadd.s32 %s125, 1
      %p129 = scmp.eq.s32.totalorder %s14, 1
      %p130 = scmp.ne.s32.totalorder %s125, %s127
      %p131 = scmp.eq.s32.totalorder %s14, 0
      %p132 = por %p130, %p131
      %p133 = scmp.ne.s32.totalorder %s125, %s127
      %p134 = scmp.eq.s32.totalorder %s19, 1
      %p135 = por %p133, %p134
      %p136 = scmp.ne.s32.totalorder %s127, %s128
      %p137 = scmp.eq.s32.totalorder %s19, 0
      %p138 = por %p136, %p137
      %p139 = scmp.ne.s32.totalorder %s127, %s128
      %p140 = scmp.eq.s32.totalorder %s20, 1
      %p141 = por %p139, %p140
      %p143 = scmp.ne.s32.totalorder %s128, %s142
      %p144 = scmp.eq.s32.totalorder %s20, 0
      %p145 = por %p143, %p144
      %s146 = ssub.s32 %s21, %s33
      %s147 = ssub.s32 %s22, %s29
      %s148 = sor.u32 %s146, %s147
      %p149 = scmp.eq.s32.totalorder %s148, 0
      %s151 = sadd.s32 %s150, 1
      %s152 = scalar_select %p149, %s150, %s151
      %p155 = pneg %p149
      %p156 = scmp.eq.s32.totalorder %s14, 1
      %p157 = por %p155, %p156
      %p158 = scmp.ne.s32.totalorder %s150, %s153
      %p159 = scmp.eq.s32.totalorder %s14, 0
      %p160 = por %p158, %p159
      %p161 = scmp.ne.s32.totalorder %s150, %s153
      %p162 = scmp.eq.s32.totalorder %s19, 1
      %p163 = por %p161, %p162
      %p164 = scmp.ne.s32.totalorder %s153, %s154
      %p165 = scmp.eq.s32.totalorder %s19, 0
      %p166 = por %p164, %p165
      %p167 = scmp.ne.s32.totalorder %s153, %s154
      %p168 = scmp.eq.s32.totalorder %s20, 1
      %p169 = por %p167, %p168
      %p171 = scmp.ne.s32.totalorder %s154, %s170
      %p172 = scmp.eq.s32.totalorder %s20, 0
      %p173 = por %p171, %p172
      %p174 = scmp.le.s32.totalorder 1, %s14
      %p175 = scmp.lt.s32.totalorder %s14, 3
      %p176 = pnand %p174, %p175
      %p177 = pneg %p176
      // Predicated region
      $region9: #{tpu_custom_call.1} parent=5 // pred_check
        _
      $region10: #{tpu_custom_call.1} parent=5 // pred_check_branch
        %179 = sbr.rel (%p176) target = $region12
      $region11: #{tpu_custom_call.1} parent=5 // pred_region
        %s180 = ssub.s32 %s14, 1
        // Predicated region
        $region13: #{tpu_custom_call.1} parent=11 // pred_check
          %p181 = pneg %p75
        $region14: #{tpu_custom_call.1} parent=11 // pred_check_branch
          %183 = sbr.rel (%p181) target = $region16
        $region15: #{tpu_custom_call.1} parent=11 // pred_region
          _
        $region16: #{tpu_custom_call.1} parent=11 // pred_fallthru
          _
        // Predicated region
        $region17: #{tpu_custom_call.1} parent=11 // pred_check
          %p184 = pneg %p96
        $region18: #{tpu_custom_call.1} parent=11 // pred_check_branch
          %186 = sbr.rel (%p184) target = $region20
        $region19: #{tpu_custom_call.1} parent=11 // pred_region
          _
        $region20: #{tpu_custom_call.1} parent=11 // pred_fallthru
          _
        // Predicated region
        $region21: #{tpu_custom_call.1} parent=11 // pred_check
          %p187 = pneg %p117
        $region22: #{tpu_custom_call.1} parent=11 // pred_check_branch
          %189 = sbr.rel (%p187) target = $region24
        $region23: #{tpu_custom_call.1} parent=11 // pred_region
          _
        $region24: #{tpu_custom_call.1} parent=11 // pred_fallthru
          _
        // Predicated region
        $region25: #{tpu_custom_call.1} parent=11 // pred_check
          %p190 = pneg %p138
        $region26: #{tpu_custom_call.1} parent=11 // pred_check_branch
          %192 = sbr.rel (%p190) target = $region28
        $region27: #{tpu_custom_call.1} parent=11 // pred_region
          _
        $region28: #{tpu_custom_call.1} parent=11 // pred_fallthru
          _
      $region12: #{tpu_custom_call.1} parent=5 // pred_fallthru
        _
      %p193 = scmp.lt.s32.totalorder %s14, 2
      // Predicated region
      $region29: #{tpu_custom_call.1} parent=5 // pred_check
        %p194 = pneg %p193
      $region30: #{tpu_custom_call.1} parent=5 // pred_check_branch
        %196 = sbr.rel (%p194) target = $region32
      $region31: #{tpu_custom_call.1} parent=5 // pred_region
        // Predicated region
        $region33: #{tpu_custom_call.1} parent=31 // pred_check
          %p197 = pneg %p48
        $region34: #{tpu_custom_call.1} parent=31 // pred_check_branch
          %199 = sbr.rel (%p197) target = $region36
        $region35: #{tpu_custom_call.1} parent=31 // pred_region
          %s200 = smul.u32 2, %s22
          %p201 = scmp.lt.s32.totalorder %s21, 1
          %s202 = scalar_select %p201, %s21, 1
          %p203 = scmp.lt.s32.totalorder %s200, 1
          %s204 = scalar_select %p203, %s200, 1
          %s205 = smul.addr %s202, 2
          %s206 = sadd.s32 %s204, %s205
          %s207 = smul.addr %s206, 8
          %s208 = scalar_lea.vmem %s0, %s207
          %s209 = smul.u32 2, %s22
        $region36: #{tpu_custom_call.1} parent=31 // pred_fallthru
          _
      $region32: #{tpu_custom_call.1} parent=5 // pred_fallthru
        _
      %p210 = scmp.le.s32.totalorder 1, %s14
      %p211 = scmp.lt.s32.totalorder %s14, 3
      %p212 = pnand %p210, %p211
      %p213 = pneg %p212
      // Predicated region
      $region37: #{tpu_custom_call.1} parent=5 // pred_check
        _
      $region38: #{tpu_custom_call.1} parent=5 // pred_check_branch
        %215 = sbr.rel (%p212) target = $region40
      $region39: #{tpu_custom_call.1} parent=5 // pred_region
        %s216 = ssub.s32 %s14, 1
        %s217 = smul.u32 2, %s24
        %p218 = scmp.lt.s32.totalorder %s23, 1
        %s219 = scalar_select %p218, %s23, 1
        %p220 = scmp.lt.s32.totalorder %s217, 1
        %s221 = scalar_select %p220, %s217, 1
        %s222 = smul.addr %s219, 2
        %s223 = sadd.s32 %s221, %s222
        %s224 = smul.addr %s223, 8
        %s225 = scalar_lea.vmem %s0, %s224
        %p226 = pneg %p54
        %p227 = pneg %p51
        %p228 = pneg %p75
        %p229 = pneg %p72
        %p230 = pneg %p96
        %p231 = pneg %p93
        %p232 = pneg %p117
        %p233 = pneg %p114
        %p234 = pneg %p138
        %p235 = pneg %p135
        %p236 = pneg %p166
        %p237 = pneg %p163
        %s238 = sand.u32 %s153, 1
        %s239 = scalar_lea.sflag [#allocation3], %s238
        %s240 = sand.u32 %s153, 1
        %s241 = smul.addr %s240, 8
        %s242 = scalar_lea.vmem [#allocation2], %s241
        %s243 = smul.u32 2, %s24
        %p244 = scmp.lt.s32.totalorder %s23, 1
        %s245 = scalar_select %p244, %s23, 1
        %p246 = scmp.lt.s32.totalorder %s243, 1
        %s247 = scalar_select %p246, %s243, 1
        %s248 = smul.addr %s245, 2
        %s249 = sadd.s32 %s247, %s248
        %s250 = smul.addr %s249, 8
        %s251 = scalar_lea.vmem %s0, %s250
        %s252 = smul.u32 2, %s24
        %v254 = vld [vmem:[%s251] sm:$0xff]
        %v255 = vld [vmem:[%s251 + $0x8] sm:$0xff]
        %v256 = vld [vmem:[%s1] sm:$0xff]
        %258 = vset.pattern.permute.xlu0 0
        %259 = vperm.xlu0 %258, %v256
        %v260 = vpop.permute.xlu0 %259
        %v262 = vmul.f32 %v254, %v260
        %v263 = vmul.f32 %v255, %v260
        %v264 = vld [vmem:[%s2] sm:$0xff]
        %266 = vset.pattern.permute.xlu0 0
        %267 = vperm.xlu0 %266, %v264
        %v268 = vpop.permute.xlu0 %267
        %v270 = vadd.f32 %v262, %v268
        %v271 = vadd.f32 %v263, %v268
        %v272 = vmax.f32 %v270, 0.0
        %v273 = vmax.f32 %v271, 0.0
        %v274 = vpack.c.bf16 %v272, %v272
        %v275 = vpack.c.bf16 %v273, %v273
        %v276 = vld [vmem:[%s3] sm:$0xf]
        %v277 = vld [vmem:[%s4] sm:$0xf]
        %v278 = vld [vmem:[%s4 + $0x4] sm:$0xf]
        %v279 = vld [vmem:[%s4 + $0x8] sm:$0xf]
        %v280 = vld [vmem:[%s4 + $0xc] sm:$0xf]
        %v281 = vld [vmem:[%s4 + $0x10] sm:$0xf]
        %v282 = vld [vmem:[%s4 + $0x14] sm:$0xf]
        %v283 = vld [vmem:[%s4 + $0x18] sm:$0xf]
        %v284 = vld [vmem:[%s4 + $0x1c] sm:$0xf]
        %v285 = vld [vmem:[%s4 + $0x20] sm:$0xf]
        %v286 = vld [vmem:[%s4 + $0x24] sm:$0xf]
        %v287 = vld [vmem:[%s4 + $0x28] sm:$0xf]
        %v288 = vld [vmem:[%s4 + $0x2c] sm:$0xf]
        %v289 = vld [vmem:[%s4 + $0x30] sm:$0xf]
        %v290 = vld [vmem:[%s4 + $0x34] sm:$0xf]
        %v291 = vld [vmem:[%s4 + $0x38] sm:$0xf]
        %v292 = vld [vmem:[%s4 + $0x3c] sm:$0xf]
        %v293 = vld [vmem:[%s4 + $0x40] sm:$0xf]
        %v294 = vld [vmem:[%s4 + $0x44] sm:$0xf]
        %v295 = vld [vmem:[%s4 + $0x48] sm:$0xf]
        %v296 = vld [vmem:[%s4 + $0x4c] sm:$0xf]
        %v297 = vld [vmem:[%s4 + $0x50] sm:$0xf]
        %v298 = vld [vmem:[%s4 + $0x54] sm:$0xf]
        %v299 = vld [vmem:[%s4 + $0x58] sm:$0xf]
        %v300 = vld [vmem:[%s4 + $0x5c] sm:$0xf]
        %v301 = vld [vmem:[%s4 + $0x60] sm:$0xf]
        %v302 = vld [vmem:[%s4 + $0x64] sm:$0xf]
        %v303 = vld [vmem:[%s4 + $0x68] sm:$0xf]
        %v304 = vld [vmem:[%s4 + $0x6c] sm:$0xf]
        %v305 = vld [vmem:[%s4 + $0x70] sm:$0xf]
        %v306 = vld [vmem:[%s4 + $0x74] sm:$0xf]
        %v307 = vld [vmem:[%s4 + $0x78] sm:$0xf]
        %v308 = vld [vmem:[%s4 + $0x7c] sm:$0xf]
        %v341 = vunpack.c.l.b16 %v277
        %v342 = vunpack.c.l.b16 %v278
        %v343 = vunpack.c.l.b16 %v279
        %v344 = vunpack.c.l.b16 %v280
        %v345 = vunpack.c.l.b16 %v281
        %v346 = vunpack.c.l.b16 %v282
        %v347 = vunpack.c.l.b16 %v283
        %v348 = vunpack.c.l.b16 %v284
        %v349 = vunpack.c.l.b16 %v285
        %v350 = vunpack.c.l.b16 %v286
        %v351 = vunpack.c.l.b16 %v287
        %v352 = vunpack.c.l.b16 %v288
        %v353 = vunpack.c.l.b16 %v289
        %v354 = vunpack.c.l.b16 %v290
        %v355 = vunpack.c.l.b16 %v291
        %v356 = vunpack.c.l.b16 %v292
        %v357 = vunpack.c.l.b16 %v293
        %v358 = vunpack.c.l.b16 %v294
        %v359 = vunpack.c.l.b16 %v295
        %v360 = vunpack.c.l.b16 %v296
        %v361 = vunpack.c.l.b16 %v297
        %v362 = vunpack.c.l.b16 %v298
        %v363 = vunpack.c.l.b16 %v299
        %v364 = vunpack.c.l.b16 %v300
        %v365 = vunpack.c.l.b16 %v301
        %v366 = vunpack.c.l.b16 %v302
        %v367 = vunpack.c.l.b16 %v303
        %v368 = vunpack.c.l.b16 %v304
        %v369 = vunpack.c.l.b16 %v305
        %v370 = vunpack.c.l.b16 %v306
        %v371 = vunpack.c.l.b16 %v307
        %v372 = vunpack.c.l.b16 %v308
        %v373 = vpack.c.b16 %v342, %v341
        %v374 = vpack.c.b16 %v344, %v343
        %v375 = vpack.c.b16 %v346, %v345
        %v376 = vpack.c.b16 %v348, %v347
        %v377 = vpack.c.b16 %v350, %v349
        %v378 = vpack.c.b16 %v352, %v351
        %v379 = vpack.c.b16 %v354, %v353
        %v380 = vpack.c.b16 %v356, %v355
        %v381 = vpack.c.b16 %v358, %v357
        %v382 = vpack.c.b16 %v360, %v359
        %v383 = vpack.c.b16 %v362, %v361
        %v384 = vpack.c.b16 %v364, %v363
        %v385 = vpack.c.b16 %v366, %v365
        %v386 = vpack.c.b16 %v368, %v367
        %v387 = vpack.c.b16 %v370, %v369
        %v388 = vpack.c.b16 %v372, %v371
        %405 = vmatprep.subr.bf16.mxu0 0
        %406 = vmatpush1.bf16.msra.mxu0 %v373
        %407 = vmatprep.subr.bf16.mxu0 0
        %408 = vmatpush1.bf16.msra.mxu0 %v374
        %409 = vmatprep.subr.bf16.mxu0 0
        %410 = vmatpush1.bf16.msra.mxu0 %v375
        %411 = vmatprep.subr.bf16.mxu0 0
        %412 = vmatpush1.bf16.msra.mxu0 %v376
        %413 = vmatprep.subr.bf16.mxu0 0
        %414 = vmatpush1.bf16.msra.mxu0 %v377
        %415 = vmatprep.subr.bf16.mxu0 0
        %416 = vmatpush1.bf16.msra.mxu0 %v378
        %417 = vmatprep.subr.bf16.mxu0 0
        %418 = vmatpush1.bf16.msra.mxu0 %v379
        %419 = vmatprep.subr.bf16.mxu0 0
        %420 = vmatpush1.bf16.msra.mxu0 %v380
        %421 = vmatprep.subr.bf16.mxu0 0
        %422 = vmatpush1.bf16.msra.mxu0 %v381
        %423 = vmatprep.subr.bf16.mxu0 0
        %424 = vmatpush1.bf16.msra.mxu0 %v382
        %425 = vmatprep.subr.bf16.mxu0 0
        %426 = vmatpush1.bf16.msra.mxu0 %v383
        %427 = vmatprep.subr.bf16.mxu0 0
        %428 = vmatpush1.bf16.msra.mxu0 %v384
        %429 = vmatprep.subr.bf16.mxu0 0
        %430 = vmatpush1.bf16.msra.mxu0 %v385
        %431 = vmatprep.subr.bf16.mxu0 0
        %432 = vmatpush1.bf16.msra.mxu0 %v386
        %433 = vmatprep.subr.bf16.mxu0 0
        %434 = vmatpush1.bf16.msra.mxu0 %v387
        %435 = vmatprep.subr.bf16.mxu0 0
        %436 = vmatpush1.bf16.msra.mxu0 %v388
        %437 = vmatprep.mubr.bf16.mxu0 %v275
        %438 = vmatmul.mubr.bf16.gmra.mrb[0].mxu0 %v274
        %v439 = vpop.f32.mrb[0].mxu0
        %v440 = vadd.f32 0.0, %v439
        %v441 = vpop.f32.mrb[0].mxu0
        %v442 = vpop.f32.mrb[0].mxu0
        %v443 = vpop.f32.mrb[0].mxu0
        %444 = vdwg.mxu0
        %v445 = vpack.c.bf16 %v440, %v440
        %vm446 = vcmask 64512
        %v448 = vsel %vm446, %v276, 0
        %vm450 = vcmask 1043456
        %v452 = vsel %vm450, %v445, 0
        %454 = vmatprep.subr.bf16.mxu0 0
        %455 = vmatpush1.bf16.msra.mxu0 %v452
        %456 = vmatprep.subr.bf16.mxu0 0
        %457 = vmatpush1.bf16.msra.mxu0 0
        %458 = vmatprep.subr.bf16.mxu0 0
        %459 = vmatpush1.bf16.msra.mxu0 0
        %460 = vmatprep.subr.bf16.mxu0 0
        %461 = vmatpush1.bf16.msra.mxu0 0
        %462 = vmatprep.subr.bf16.mxu0 0
        %463 = vmatpush1.bf16.msra.mxu0 0
        %464 = vmatprep.subr.bf16.mxu0 0
        %465 = vmatpush1.bf16.msra.mxu0 0
        %466 = vmatprep.subr.bf16.mxu0 0
        %467 = vmatpush1.bf16.msra.mxu0 0
        %468 = vmatprep.subr.bf16.mxu0 0
        %469 = vmatpush1.bf16.msra.mxu0 0
        %470 = vmatprep.subr.bf16.mxu0 0
        %471 = vmatpush1.bf16.msra.mxu0 0
        %472 = vmatprep.subr.bf16.mxu0 0
        %473 = vmatpush1.bf16.msra.mxu0 0
        %474 = vmatprep.subr.bf16.mxu0 0
        %475 = vmatpush1.bf16.msra.mxu0 0
        %476 = vmatprep.subr.bf16.mxu0 0
        %477 = vmatpush1.bf16.msra.mxu0 0
        %478 = vmatprep.subr.bf16.mxu0 0
        %479 = vmatpush1.bf16.msra.mxu0 0
        %480 = vmatprep.subr.bf16.mxu0 0
        %481 = vmatpush1.bf16.msra.mxu0 0
        %482 = vmatprep.subr.bf16.mxu0 0
        %483 = vmatpush1.bf16.msra.mxu0 0
        %484 = vmatprep.subr.bf16.mxu0 0
        %485 = vmatpush1.bf16.msra.mxu0 0
        %486 = vmatprep.mubr.bf16.mxu0 0
        %487 = vmatmul.mubr.bf16.gmra.mrb[0].mxu0 %v448
        %v488 = vpop.f32.mrb[0].mxu0
        %v489 = vadd.f32 0.0, %v488
        %v490 = vpop.f32.mrb[0].mxu0
        %v491 = vpop.f32.mrb[0].mxu0
        %v492 = vpop.f32.mrb[0].mxu0
        %493 = vdwg.mxu0
        %vm494 = vcmask 523264
        %495 = vst.msk [vmem:[%s242] sm:$0xff] %vm494, %v489
        %s496 = sand.u32 %s153, 1
        %s497 = scalar_lea.sflag [#allocation3], %s496
        %s498 = sand.u32 %s153, 1
        %s499 = smul.addr %s498, 8
        %s500 = scalar_lea.vmem [#allocation2], %s499
        // Predicated region
        $region41: #{tpu_custom_call.1} parent=39 // pred_check
          %p501 = pneg %p163
        $region42: #{tpu_custom_call.1} parent=39 // pred_check_branch
          %503 = sbr.rel (%p501) target = $region44
        $region43: #{tpu_custom_call.1} parent=39 // pred_region
          %s505 = ssub.s32 128, 128
          %506 = vsyncadd %s497, %s505
          %s507 = sadd.s32 %s24, %s23
          %s508 = smul.addr %s507, 128
          %s509 = scalar_lea.hbm %s5, %s508
          %s511 = sshll.u32 %s500, 4
          %s512 = int_to_ptr.vmem [resolvable:$true] %s511
          %514 = dma.vmem_to_hbm [thread:$0]  %s512, 128, %s509, %s497
        $region44: #{tpu_custom_call.1} parent=39 // pred_fallthru
          _
      $region40: #{tpu_custom_call.1} parent=5 // pred_fallthru
        _
      %p515 = scmp.le.s32.totalorder 2, %s14
      // Predicated region
      $region45: #{tpu_custom_call.1} parent=5 // pred_check
        %p516 = pneg %p515
      $region46: #{tpu_custom_call.1} parent=5 // pred_check_branch
        %518 = sbr.rel (%p516) target = $region48
      $region47: #{tpu_custom_call.1} parent=5 // pred_region
        %s519 = ssub.s32 %s14, 2
        // Predicated region
        $region49: #{tpu_custom_call.1} parent=47 // pred_check
          %p520 = pneg %p169
        $region50: #{tpu_custom_call.1} parent=47 // pred_check_branch
          %522 = sbr.rel (%p520) target = $region52
        $region51: #{tpu_custom_call.1} parent=47 // pred_region
          %s523 = sand.u32 %s154, 1
          %s524 = scalar_lea.sflag [#allocation3], %s523
          %s525 = sand.u32 %s154, 1
          %s526 = smul.addr %s525, 8
          %s527 = scalar_lea.vmem [#allocation2], %s526
          %528 = dma.done %s524, 128
        $region52: #{tpu_custom_call.1} parent=47 // pred_fallthru
          _
      $region48: #{tpu_custom_call.1} parent=5 // pred_fallthru
        _
    $region6: #{tpu_custom_call.1} parent=1 // loop_footer
      %s18 = sadd.s32 1, %s14
    $region7: #{tpu_custom_call.1} parent=1 // loop_footer_branch
      %13 = sbr.rel target = $region3
    $region8: #{tpu_custom_call.1} parent=1 // loop_exit
      _
    %529 = vsyncpa [#allocation3], 1
    %s530 = scalar_lea.sflag [#allocation3], 1
    %531 = vsyncpa %s530, 1

</llo_original>
